<compile_context>
chip_gen: v5e
topology: v5e:2x2
jax: 0.10.0
libtpu: 0.0.40
codegen_flags: <defaults>
</compile_context>

<pallas_src>
import jax
import jax.numpy as jnp
from jax.experimental import pallas as pl
from jax.experimental.pallas import tpu as pltpu


def _gelu_mul_kernel(x_ref, y_ref, o_ref):
    x = x_ref[...].astype(jnp.float32)
    y = y_ref[...].astype(jnp.float32)
    # Constants folded: 0.79788456*x*(1 + 0.044715*x^2) == x*(0.79788456 + 0.0356774081*x^2)
    inner = x * (0.79788456 + 0.0356774081 * (x * x))
    o_ref[...] = ((0.5 * (x * y)) * (1.0 + jnp.tanh(inner))).astype(o_ref.dtype)


def _sublane_granularity(dtype):
    itemsize = jnp.dtype(dtype).itemsize
    if itemsize >= 4:
        return 8
    if itemsize == 2:
        return 16
    return 32


def gelu_mul_fwd(x, y, *, target_tile_bytes=4 * 1024 * 1024):
    """Forward of megatron gelu_wrc_func: tanh-approx GELU(x) * y, elementwise."""
    assert x.shape == y.shape, "x and y must have the same shape"
    assert x.dtype == y.dtype, "x and y must have the same dtype"
    orig_shape = x.shape
    total = x.size
    itemsize = jnp.dtype(x.dtype).itemsize

    # Lane-dense slab: widest cols (multiple of 128) dividing total exactly so
    # the reshape is metadata-only and no padding is needed.
    cols = None
    for c in (4096, 2048, 1024, 512, 256, 128):
        if total % c == 0:
            cols = c
            break

    pad = 0
    if cols is None:
        # Last-resort fallback for ragged totals: pad to a multiple of 128.
        cols = 128
        padded_total = pl.cdiv(total, cols) * cols
        pad = padded_total - total
        x2 = jnp.pad(x.reshape(-1), (0, pad)).reshape(-1, cols)
        y2 = jnp.pad(y.reshape(-1), (0, pad)).reshape(-1, cols)
    else:
        x2 = x.reshape(-1, cols)
        y2 = y.reshape(-1, cols)
    rows = x2.shape[0]

    # Row tile: ~target_tile_bytes per array, rounded to the dtype's packed
    # sublane granularity.
    g = _sublane_granularity(x.dtype)
    tr = (target_tile_bytes // (cols * itemsize)) // g * g
    tr = max(tr, g)
    if rows <= g:
        tr = rows  # full extent; a single tiny block is always legal
    elif rows <= tr:
        # Whole slab would fit one tile: split into >=2 blocks so both v7x
        # TensorCores get work under dimension_semantics=("parallel",).
        half = pl.cdiv(pl.cdiv(rows, 2), g) * g  # round up to granularity
        tr = half if half < rows else rows
    # else: rows > tr -> already multiple blocks; Pallas masks the ragged tail.

    grid = (pl.cdiv(rows, tr),)
    out2 = pl.pallas_call(
        _gelu_mul_kernel,
        out_shape=jax.ShapeDtypeStruct((rows, cols), x.dtype),
        grid_spec=pltpu.PrefetchScalarGridSpec(
            num_scalar_prefetch=0,
            grid=grid,
            in_specs=[
                pl.BlockSpec((tr, cols), lambda i: (i, 0)),
                pl.BlockSpec((tr, cols), lambda i: (i, 0)),
            ],
            out_specs=pl.BlockSpec((tr, cols), lambda i: (i, 0)),
        ),
        compiler_params=pltpu.CompilerParams(
            dimension_semantics=("parallel",),
            # 3 arrays x 2 buffers x <=4 MiB tiles = <=24 MiB double-buffered
            # footprint; 48 MiB limit fits v7x's 64 MiB physical VMEM and
            # v5e/v6e's 128 MiB.
            vmem_limit_bytes=48 * 1024 * 1024,
        ),
        cost_estimate=pl.CostEstimate(
            flops=8 * rows * cols,
            transcendentals=rows * cols,
            bytes_accessed=3 * rows * cols * itemsize,
        ),
        # NOTE: callers that can donate the activation buffer may additionally
        # pass input_output_aliases={0: 0} to avoid a third HBM allocation.
    )(x2, y2)

    if pad:
        return out2.reshape(-1)[:total].reshape(orig_shape)
    return out2.reshape(orig_shape)


class GeluWRC:
    """JAX equivalent of megatron gelu_wrc_func (forward only).

    # TODO(synk): backward (gelu_bwd) and the recompute-frame bookkeeping are
    # autograd machinery and are not translated here (forward pass only).
    """

    def __call__(self, x, y):
        return gelu_mul_fwd(x, y)


def _reference(x, y):
    xf = x.astype(jnp.float32)
    yf = y.astype(jnp.float32)
    g = xf * 0.5 * (1.0 + jnp.tanh(0.79788456 * xf * (1.0 + 0.044715 * xf * xf)))
    return (g * yf).astype(x.dtype)


if __name__ == "__main__":
    key = jax.random.PRNGKey(0)
    mod = GeluWRC()

    # Case 1: typical small MLP activation shape [batch, seq, hidden] (f32).
    k1, k2 = jax.random.split(key)
    x = jax.random.normal(k1, (2, 8, 32), dtype=jnp.float32)
    y = jax.random.normal(k2, (2, 8, 32), dtype=jnp.float32)
    out = jax.block_until_ready(mod(x, y))
    ref = _reference(x, y)
    assert out.shape == x.shape and out.dtype == x.dtype
    assert jnp.allclose(out, ref, atol=1e-5, rtol=1e-5)

    # Case 2: multi-row slab exercising the >=2-block grid / megacore split.
    k3, k4 = jax.random.split(k1)
    xm = jax.random.normal(k3, (2, 64, 1024), dtype=jnp.float32)
    ym = jax.random.normal(k4, (2, 64, 1024), dtype=jnp.float32)
    out_m = jax.block_until_ready(mod(xm, ym))
    ref_m = _reference(xm, ym)
    assert out_m.shape == xm.shape and out_m.dtype == xm.dtype
    assert jnp.allclose(out_m, ref_m, atol=1e-5, rtol=1e-5)

    # Case 3: odd-sized shape to exercise the pad fallback path.
    k5, k6 = jax.random.split(k3)
    xo = jax.random.normal(k5, (3, 7, 33), dtype=jnp.float32)
    yo = jax.random.normal(k6, (3, 7, 33), dtype=jnp.float32)
    out_o = jax.block_until_ready(mod(xo, yo))
    ref_o = _reference(xo, yo)
    assert out_o.shape == xo.shape and out_o.dtype == xo.dtype
    assert jnp.allclose(out_o, ref_o, atol=1e-5, rtol=1e-5)

    # Case 4: bf16 activations (dtype-aware sublane granularity path).
    k7, k8 = jax.random.split(k5)
    xb = jax.random.normal(k7, (2, 8, 256), dtype=jnp.bfloat16)
    yb = jax.random.normal(k8, (2, 8, 256), dtype=jnp.bfloat16)
    out_b = jax.block_until_ready(mod(xb, yb))
    ref_b = _reference(xb, yb)
    assert out_b.shape == xb.shape and out_b.dtype == xb.dtype
    assert jnp.allclose(out_b.astype(jnp.float32), ref_b.astype(jnp.float32),
                        atol=1e-2, rtol=1e-2)

    print("KERNEL_OK")
</pallas_src>

<mosaic_0001>
module attributes {stable_mosaic.version = 11 : i64} {
  func.func @_gelu_mul_kernel(%arg0: i32, %arg1: memref<1x512xf32, #tpu.memory_space<vmem>>, %arg2: memref<1x512xf32, #tpu.memory_space<vmem>>, %arg3: memref<1x512xf32, #tpu.memory_space<vmem>>) attributes {dimension_semantics = [#tpu.dimension_semantics<parallel>], iteration_bounds = array<i64: 1>, scalar_prefetch = 0 : i64, scratch_operands = 0 : i64, tpu.core_type = #tpu.core_type<tc>, window_params = [{transform_indices = @transform_0, window_bounds = array<i64: 1, 512>}, {transform_indices = @transform_1, window_bounds = array<i64: 1, 512>}, {transform_indices = @transform_2, window_bounds = array<i64: 1, 512>}]} {
    %c0 = arith.constant 0 : index
    %c0_0 = arith.constant 0 : index
    %0 = vector.load %arg1[%c0, %c0_0] : memref<1x512xf32, #tpu.memory_space<vmem>>, vector<1x512xf32>
    %c0_1 = arith.constant 0 : index
    %c0_2 = arith.constant 0 : index
    %1 = vector.load %arg2[%c0_1, %c0_2] : memref<1x512xf32, #tpu.memory_space<vmem>>, vector<1x512xf32>
    %2 = arith.mulf %0, %0 : vector<1x512xf32>
    %cst = arith.constant 0.0356774069 : f32
    %3 = vector.broadcast %cst : f32 to vector<1x512xf32>
    %4 = arith.mulf %3, %2 : vector<1x512xf32>
    %cst_3 = arith.constant 0.797884583 : f32
    %5 = vector.broadcast %cst_3 : f32 to vector<1x512xf32>
    %6 = arith.addf %5, %4 : vector<1x512xf32>
    %7 = arith.mulf %0, %6 : vector<1x512xf32>
    %8 = arith.mulf %0, %1 : vector<1x512xf32>
    %cst_4 = arith.constant 5.000000e-01 : f32
    %9 = vector.broadcast %cst_4 : f32 to vector<1x512xf32>
    %10 = arith.mulf %9, %8 : vector<1x512xf32>
    %11 = math.tanh %7 : vector<1x512xf32>
    %cst_5 = arith.constant 1.000000e+00 : f32
    %12 = vector.broadcast %cst_5 : f32 to vector<1x512xf32>
    %13 = arith.addf %12, %11 : vector<1x512xf32>
    %14 = arith.mulf %10, %13 : vector<1x512xf32>
    %c0_6 = arith.constant 0 : index
    %c0_7 = arith.constant 0 : index
    %15 = vector.load %arg3[%c0_6, %c0_7] : memref<1x512xf32, #tpu.memory_space<vmem>>, vector<1x512xf32>
    tpu.vector_store %arg3[%c0_6, %c0_7], %14 {strides = array<i32>} : memref<1x512xf32, #tpu.memory_space<vmem>>, vector<1x512xf32>,
    return
  }
  func.func @transform_0(%arg0: i32) -> (i32, i32) {
    %c0_i32 = arith.constant 0 : i32
    %c0_i32_0 = arith.constant 0 : i32
    return %arg0, %c0_i32 : i32, i32
  }
  func.func @transform_1(%arg0: i32) -> (i32, i32) {
    %c0_i32 = arith.constant 0 : i32
    %c0_i32_0 = arith.constant 0 : i32
    return %arg0, %c0_i32 : i32, i32
  }
  func.func @transform_2(%arg0: i32) -> (i32, i32) {
    %c0_i32 = arith.constant 0 : i32
    %c0_i32_0 = arith.constant 0 : i32
    return %arg0, %c0_i32 : i32, i32
  }
}

</mosaic_0001>

<llo_original>
// kernel: tpu_custom_call.1
$region0: #{tpu_custom_call.1}
  #allocation0 [shape = 'u32[]', space=smem, size = 0x4, offset = 0x4, fixed_abs, tag = 'smem constant byte address 0x4 - core index']
  #allocation1 [shape = 'u32[72,128]{1,0:T(1,128)}', space=vmem, size = 0x9000, scoped, tag = 'internal scratch']
  %s0 = inlined_call_operand.hbm [shape: f32[1,512], index: 0, kind: input, shape index: {}]
  %s1 = inlined_call_operand.hbm [shape: f32[1,512], index: 1, kind: input, shape index: {}]
  %s2 = inlined_call_operand.hbm [shape: f32[1,512], index: 2, kind: output, shape index: {}]
  %s3 = sld [smem:[#allocation0]]
  $region26: #{tpu_custom_call.1} parent=0
    _
  %s5 = ssub.s32 1, %s3
  %s6 = scalar_select 0, %s5, %s3
  $region1: #{tpu_custom_call.1} parent=0
    #allocation2 [shape = 'u8[2048]{0}', space=vmem, size = 0x800, scoped, tag = 'input window, operand 0, single buffered']
    #allocation3 [shape = 's32[1]{0}', space=sflag, size = 0x4, scoped, tag = 'scoped memory for tpu_custom_call.1']
    #allocation4 [shape = 's32[1]{0}', space=sflag, size = 0x4, scoped, tag = 'scoped memory for tpu_custom_call.1']
    #allocation5 [shape = 'u8[2048]{0}', space=vmem, size = 0x800, scoped, tag = 'input window, operand 1, single buffered']
    #allocation6 [shape = 's32[1]{0}', space=sflag, size = 0x4, scoped, tag = 'scoped memory for tpu_custom_call.1']
    #allocation7 [shape = 'u8[2048]{0}', space=vmem, size = 0x800, scoped, tag = 'output window, operand 0, single buffered']
    %7 = vsyncpa [#allocation3], 0
    %8 = vsyncpa [#allocation6], 0
    %9 = vsyncpa [#allocation4], 0
    // Predicated region
    $region2: #{tpu_custom_call.1} parent=1 // pred_check
      _
    $region3: #{tpu_custom_call.1} parent=1 // pred_check_branch
      %11 = sbr.rel (0) target = $region5
    $region4: #{tpu_custom_call.1} parent=1 // pred_region
      %13 = vsyncadd [#allocation3], 0
      %s15 = sshll.u32 %s0, 4
      %s16 = int_to_ptr.hbm [resolvable:$true] %s15
      %s17 = sshll.u32 [#allocation2], 4
      %s18 = int_to_ptr.vmem [resolvable:$true] %s17
      %20 = dma.hbm_to_vmem [thread:$0]  %s16, 64, %s18, [#allocation3]
    $region5: #{tpu_custom_call.1} parent=1 // pred_fallthru
      _
    // Predicated region
    $region6: #{tpu_custom_call.1} parent=1 // pred_check
      _
    $region7: #{tpu_custom_call.1} parent=1 // pred_check_branch
      %22 = sbr.rel (0) target = $region9
    $region8: #{tpu_custom_call.1} parent=1 // pred_region
      %24 = vsyncadd [#allocation6], 0
      %s26 = sshll.u32 %s1, 4
      %s27 = int_to_ptr.hbm [resolvable:$true] %s26
      %s28 = sshll.u32 [#allocation5], 4
      %s29 = int_to_ptr.vmem [resolvable:$true] %s28
      %31 = dma.hbm_to_vmem [thread:$0]  %s27, 64, %s29, [#allocation6]
    $region9: #{tpu_custom_call.1} parent=1 // pred_fallthru
      _
    // Predicated region
    $region10: #{tpu_custom_call.1} parent=1 // pred_check
      _
    $region11: #{tpu_custom_call.1} parent=1 // pred_check_branch
      %33 = sbr.rel (0) target = $region13
    $region12: #{tpu_custom_call.1} parent=1 // pred_region
      %35 = dma.done [#allocation3], 64
    $region13: #{tpu_custom_call.1} parent=1 // pred_fallthru
      _
    // Predicated region
    $region14: #{tpu_custom_call.1} parent=1 // pred_check
      _
    $region15: #{tpu_custom_call.1} parent=1 // pred_check_branch
      %37 = sbr.rel (0) target = $region17
    $region16: #{tpu_custom_call.1} parent=1 // pred_region
      %39 = dma.done [#allocation6], 64
    $region17: #{tpu_custom_call.1} parent=1 // pred_fallthru
      _
    %v40 = vld [vmem:[#allocation2] sm:$0xf]
    %v41 = vld [vmem:[#allocation5] sm:$0xf]
    %v42 = vmul.f32 %v40, %v40
    %v43 = vmul.f32 %v42, 0.035677407
    %v44 = vadd.f32 %v43, 0.7978846
    %v45 = vmul.f32 %v40, %v44
    %v46 = vmul.f32 %v40, %v41
    %v47 = vmul.f32 %v46, 0.5
    %v48 = vtanh.pop %v45
    %v49 = vadd.f32 %v48, 1.0
    %v50 = vmul.f32 %v47, %v49
    %v51 = vlaneseq
    %vm52 = vcmp.ge.s32.totalorder %v51, 0
    %vm53 = vcmp.lt.s32.totalorder %v51, 512
    %vm54 = vmand %vm52, %vm53
    %55 = vst.msk [vmem:[#allocation7] sm:$0xf] %vm54, %v50
    // Predicated region
    $region18: #{tpu_custom_call.1} parent=1 // pred_check
      _
    $region19: #{tpu_custom_call.1} parent=1 // pred_check_branch
      %57 = sbr.rel (0) target = $region21
    $region20: #{tpu_custom_call.1} parent=1 // pred_region
      %59 = vsyncadd [#allocation4], 0
      %s61 = sshll.u32 [#allocation7], 4
      %s62 = int_to_ptr.vmem [resolvable:$true] %s61
      %s63 = sshll.u32 %s2, 4
      %s64 = int_to_ptr.hbm [resolvable:$true] %s63
      %66 = dma.vmem_to_hbm [thread:$0]  %s62, 64, %s64, [#allocation4]
    $region21: #{tpu_custom_call.1} parent=1 // pred_fallthru
      _
    // Predicated region
    $region22: #{tpu_custom_call.1} parent=1 // pred_check
      _
    $region23: #{tpu_custom_call.1} parent=1 // pred_check_branch
      %68 = sbr.rel (0) target = $region25
    $region24: #{tpu_custom_call.1} parent=1 // pred_region
      %70 = dma.done [#allocation4], 64
    $region25: #{tpu_custom_call.1} parent=1 // pred_fallthru
      _
    %71 = vsyncpa [#allocation3], 1
    %72 = vsyncpa [#allocation6], 1
    %73 = vsyncpa [#allocation4], 1

</llo_original>
